<compile_context>
chip_gen: v7x
topology: tpu7x:2x2x1
jax: 0.10.0
libtpu: 0.0.40
codegen_flags: <defaults>
</compile_context>

<pallas_src>
import jax
import jax.numpy as jnp
from jax.experimental import pallas as pl
from jax.experimental.pallas import tpu as pltpu


def _round_up(x, m):
    return (x + m - 1) // m * m


def critic_kernel(x_ref, w1_ref, b1_ref, w2_ref, b2_ref, out_ref):
    # fc1: [TB, D] @ [D, H] on the MXU, f32 accumulation.
    h = jnp.dot(x_ref[...], w1_ref[...], preferred_element_type=jnp.float32)
    # bias add + ReLU on the VPU (kept in f32).
    h = jnp.maximum(h + b1_ref[...], 0.0)
    # fc2 with out_features == 1: VPU multiply + cross-lane reduction instead
    # of an N=1 MXU matmul (uses otherwise-idle VPU/XLU slots, drops the
    # lane-sparse (H, 1) weight tile entirely).
    v = jnp.sum(h * w2_ref[...], axis=-1)          # [TB]
    v = v + b2_ref[0, 0]                           # scalar bias from SMEM
    # Lane-dense store: batch rows live on the lane axis of the output block.
    out_ref[...] = v[None, :].astype(out_ref.dtype)


def critic_forward(x, w1_t, b1_row, w2_row, b2_2d):
    """x: [B, D]; w1_t: [D, H] (pre-transposed once at init);
    b1_row: [1, H]; w2_row: [1, H]; b2_2d: [1, 1].  Returns value: [B, 1]."""
    B, D = x.shape
    H = w1_t.shape[1]

    # Pick a batch tile. Small problems: one lane-dense tile covering all of B
    # (padded to a sublane multiple). Large problems: 512-row tiles (multiple
    # of 8 sublanes and 128 lanes) so the auto double-buffered pipeline kicks
    # in while weights stay VMEM-resident.
    if B <= 512:
        Bp = _round_up(B, 8)
        TB = Bp
    else:
        TB = 512
        Bp = _round_up(B, TB)
    if Bp != B:
        x = jnp.pad(x, ((0, Bp - B), (0, 0)))
    num_tiles = Bp // TB

    itemsize = jnp.dtype(x.dtype).itemsize
    cost = pl.CostEstimate(
        flops=2 * Bp * D * H + 3 * Bp * H,
        transcendentals=0,
        bytes_accessed=(Bp * D + D * H + H + H + 1 + Bp) * itemsize,
    )

    out_row = pl.pallas_call(
        critic_kernel,
        out_shape=jax.ShapeDtypeStruct((1, Bp), x.dtype),
        grid_spec=pl.GridSpec(
            grid=(num_tiles,),
            in_specs=[
                # x: tiled over batch; D is the full (lane) dim.
                pl.BlockSpec((TB, D), lambda i: (i, 0)),
                # Weights / biases: same block every step -> stay resident.
                pl.BlockSpec((D, H), lambda i: (0, 0)),
                pl.BlockSpec((1, H), lambda i: (0, 0)),
                pl.BlockSpec((1, H), lambda i: (0, 0)),
                # Scalar bias in SMEM (no VMEM tile / masked vector load).
                pl.BlockSpec(memory_space=pltpu.MemorySpace.SMEM),
            ],
            # Lane-dense output slab: batch on the lane axis.
            out_specs=pl.BlockSpec((1, TB), lambda i: (0, i)),
        ),
        compiler_params=pltpu.CompilerParams(
            dimension_semantics=("parallel",),
        ),
        cost_estimate=cost,
    )(x, w1_t, b1_row, w2_row, b2_2d)

    # Back to the [B, 1] the PyTorch module returns.
    return out_row[0, :B].reshape(B, 1)


def init_params(key, input_dim, hidden_dim):
    # Deterministic init mirroring nn.Linear's uniform(-1/sqrt(fan_in), +...),
    # in PyTorch layout: w1 [H, D], b1 [H], w2 [1, H], b2 [1].
    k1, k2, k3, k4 = jax.random.split(key, 4)
    bound1 = 1.0 / jnp.sqrt(input_dim)
    bound2 = 1.0 / jnp.sqrt(hidden_dim)
    w1 = jax.random.uniform(k1, (hidden_dim, input_dim), jnp.float32, -bound1, bound1)
    b1 = jax.random.uniform(k2, (hidden_dim,), jnp.float32, -bound1, bound1)
    w2 = jax.random.uniform(k3, (1, hidden_dim), jnp.float32, -bound2, bound2)
    b2 = jax.random.uniform(k4, (1,), jnp.float32, -bound2, bound2)
    return w1, b1, w2, b2


def prepare_params(w1, b1, w2, b2):
    """One-time layout prep (NOT per forward call): [in, out] weights,
    broadcast-ready biases."""
    H = w1.shape[0]
    return w1.T, b1.reshape(1, H), w2.reshape(1, H), b2.reshape(1, 1)


# TODO(synk): for very large D/H (e.g. f32 W1 > ~32 MiB), add a hidden-dim grid
# axis with a VMEM accumulator so the working set fits v7x's 64 MiB VMEM; and
# consider bf16 weight storage on v6e/v7x to halve HBM traffic.

if __name__ == "__main__":
    key = jax.random.PRNGKey(0)
    kx, kp = jax.random.split(key)

    batch, input_dim, hidden_dim = 8, 32, 32
    x = jax.random.normal(kx, (batch, input_dim), jnp.float32)
    w1, b1, w2, b2 = init_params(kp, input_dim, hidden_dim)
    params = prepare_params(w1, b1, w2, b2)  # one-time, not per forward

    value = critic_forward(x, *params)
    value = jax.block_until_ready(value)

    # Reference check in plain JAX (same semantics as the PyTorch forward).
    ref = jnp.maximum(x @ w1.T + b1, 0.0) @ w2.T + b2
    assert value.shape == (batch, 1)
    assert jnp.allclose(value, ref, atol=1e-5), "mismatch vs reference"

    print("KERNEL_OK")
</pallas_src>

<mosaic_0001>
module attributes {stable_mosaic.version = 11 : i64} {
  func.func @critic_kernel(%arg0: i32, %arg1: memref<8x32xf32, #tpu.memory_space<vmem>>, %arg2: memref<32x32xf32, #tpu.memory_space<vmem>>, %arg3: memref<1x32xf32, #tpu.memory_space<vmem>>, %arg4: memref<1x32xf32, #tpu.memory_space<vmem>>, %arg5: memref<1x1xf32, #tpu.memory_space<smem>>, %arg6: memref<1x8xf32, #tpu.memory_space<vmem>>) attributes {dimension_semantics = [#tpu.dimension_semantics<parallel>], iteration_bounds = array<i64: 1>, scalar_prefetch = 0 : i64, scratch_operands = 0 : i64, tpu.core_type = #tpu.core_type<tc>, window_params = [{transform_indices = @transform_0, window_bounds = array<i64: 8, 32>}, {pipeline_mode = #tpu.pipeline_mode<synchronous>, transform_indices = @transform_1, window_bounds = array<i64: 32, 32>}, {pipeline_mode = #tpu.pipeline_mode<synchronous>, transform_indices = @transform_2, window_bounds = array<i64: 1, 32>}, {pipeline_mode = #tpu.pipeline_mode<synchronous>, transform_indices = @transform_3, window_bounds = array<i64: 1, 32>}, {transform_indices = @transform_4, window_bounds = array<i64: 1, 1>}, {transform_indices = @transform_5, window_bounds = array<i64: 1, 8>}]} {
    %c0 = arith.constant 0 : index
    %c0_0 = arith.constant 0 : index
    %0 = vector.load %arg1[%c0, %c0_0] : memref<8x32xf32, #tpu.memory_space<vmem>>, vector<8x32xf32>
    %c0_1 = arith.constant 0 : index
    %c0_2 = arith.constant 0 : index
    %1 = vector.load %arg2[%c0_1, %c0_2] : memref<32x32xf32, #tpu.memory_space<vmem>>, vector<32x32xf32>
    %cst = arith.constant dense<0.000000e+00> : vector<8x32xf32>
    %2 = tpu.matmul %0, %1, %cst {dimension_numbers = #tpu.dot_dimension_numbers<[1], [0], [0], [1], [0, 0, 1, 1], [], []>} : vector<8x32xf32>, vector<32x32xf32>, vector<8x32xf32> -> vector<8x32xf32>
    %c0_3 = arith.constant 0 : index
    %c0_4 = arith.constant 0 : index
    %3 = vector.load %arg3[%c0_3, %c0_4] : memref<1x32xf32, #tpu.memory_space<vmem>>, vector<1x32xf32>
    %4 = vector.broadcast %3 : vector<1x32xf32> to vector<8x32xf32>
    %5 = arith.addf %2, %4 : vector<8x32xf32>
    %cst_5 = arith.constant 0.000000e+00 : f32
    %6 = vector.broadcast %cst_5 : f32 to vector<8x32xf32>
    %7 = arith.maximumf %5, %6 : vector<8x32xf32>
    %c0_6 = arith.constant 0 : index
    %c0_7 = arith.constant 0 : index
    %8 = vector.load %arg4[%c0_6, %c0_7] : memref<1x32xf32, #tpu.memory_space<vmem>>, vector<1x32xf32>
    %9 = vector.broadcast %8 : vector<1x32xf32> to vector<8x32xf32>
    %10 = arith.mulf %7, %9 : vector<8x32xf32>
    %cst_8 = arith.constant dense<0.000000e+00> : vector<8xf32>
    %11 = vector.multi_reduction <add>, %10, %cst_8 [1] : vector<8x32xf32> to vector<8xf32>
    %c0_9 = arith.constant 0 : index
    %c0_10 = arith.constant 0 : index
    %12 = memref.load %arg5[%c0_9, %c0_10] : memref<1x1xf32, #tpu.memory_space<smem>>
    %13 = vector.broadcast %12 : f32 to vector<8xf32>
    %14 = arith.addf %11, %13 : vector<8xf32>
    %15 = vector.shape_cast %14 : vector<8xf32> to vector<1x8xf32>
    %c0_11 = arith.constant 0 : index
    %c0_12 = arith.constant 0 : index
    %16 = vector.load %arg6[%c0_11, %c0_12] : memref<1x8xf32, #tpu.memory_space<vmem>>, vector<1x8xf32>
    tpu.vector_store %arg6[%c0_11, %c0_12], %15 {strides = array<i32>} : memref<1x8xf32, #tpu.memory_space<vmem>>, vector<1x8xf32>,
    return
  }
  func.func @transform_0(%arg0: i32) -> (i32, i32) {
    %c0_i32 = arith.constant 0 : i32
    %c0_i32_0 = arith.constant 0 : i32
    return %arg0, %c0_i32 : i32, i32
  }
  func.func @transform_1(%arg0: i32) -> (i32, i32) {
    %c0_i32 = arith.constant 0 : i32
    %c0_i32_0 = arith.constant 0 : i32
    %c0_i32_1 = arith.constant 0 : i32
    return %c0_i32, %c0_i32_0 : i32, i32
  }
  func.func @transform_2(%arg0: i32) -> (i32, i32) {
    %c0_i32 = arith.constant 0 : i32
    %c0_i32_0 = arith.constant 0 : i32
    %c0_i32_1 = arith.constant 0 : i32
    return %c0_i32, %c0_i32_0 : i32, i32
  }
  func.func @transform_3(%arg0: i32) -> (i32, i32) {
    %c0_i32 = arith.constant 0 : i32
    %c0_i32_0 = arith.constant 0 : i32
    %c0_i32_1 = arith.constant 0 : i32
    return %c0_i32, %c0_i32_0 : i32, i32
  }
  func.func @transform_4(%arg0: i32) -> (i32, i32) {
    %c0_i32 = arith.constant 0 : i32
    %c0_i32_0 = arith.constant 0 : i32
    %c0_i32_1 = arith.constant 0 : i32
    return %c0_i32, %c0_i32_0 : i32, i32
  }
  func.func @transform_5(%arg0: i32) -> (i32, i32) {
    %c0_i32 = arith.constant 0 : i32
    %c0_i32_0 = arith.constant 0 : i32
    return %c0_i32, %arg0 : i32, i32
  }
}

</mosaic_0001>

<llo_original>
// kernel: tpu_custom_call.1
$region0: #{tpu_custom_call.1}
  #allocation0 [shape = 'u32[]', space=smem, size = 0x4, offset = 0x4, fixed_abs, tag = 'smem constant byte address 0x4 - core index']
  #allocation1 [shape = 'u32[144,128]{1,0:T(1,128)}', space=vmem, size = 0x12000, scoped, tag = 'internal scratch']
  #allocation2 [shape = 'f32[1,1]{1,0:T(1,128)S(6)}', space=smem, size = 0x200, scoped, tag = 'scoped memory for tpu_custom_call.1']
  %s0 = inlined_call_operand.hbm [shape: f32[8,32], index: 0, kind: input, shape index: {}]
  %s1 = inlined_call_operand.hbm [shape: f32[32,32], index: 1, kind: input, shape index: {}]
  %s2 = inlined_call_operand.vmem [shape: f32[1,32], index: 2, kind: input, shape index: {}]
  %s3 = inlined_call_operand.vmem [shape: f32[1,32], index: 3, kind: input, shape index: {}]
  %s4 = inlined_call_operand.<no memory space> [shape: f32[1,1], index: 4, kind: input, shape index: {}]
  %s5 = inlined_call_operand.hbm [shape: f32[1,8], index: 5, kind: output, shape index: {}]
  %s6 = sld [smem:[#allocation0]]
  $region38: #{tpu_custom_call.1} parent=0
    _
  %s8 = ssub.s32 1, %s6
  %s9 = scalar_select 0, %s8, %s6
  %10 = sst [smem:[#allocation2]] %s4
  $region1: #{tpu_custom_call.1} parent=0
    #allocation3 [shape = 'u8[4096]{0}', space=vmem, size = 0x1000, scoped, tag = 'input window, operand 0, single buffered']
    #allocation4 [shape = 's32[1]{0}', space=sflag, size = 0x4, scoped, tag = 'scoped memory for tpu_custom_call.1']
    #allocation5 [shape = 's32[1]{0}', space=sflag, size = 0x4, scoped, tag = 'scoped memory for tpu_custom_call.1']
    #allocation6 [shape = 'u8[16384]{0}', space=vmem, size = 0x4000, scoped, tag = 'input window, operand 1, single buffered']
    #allocation7 [shape = 's32[1]{0}', space=sflag, size = 0x4, scoped, tag = 'scoped memory for tpu_custom_call.1']
    #allocation8 [shape = 'u8[512]{0}', space=vmem, size = 0x400, scoped, tag = 'output window, operand 0, single buffered']
    %11 = vsyncpa [#allocation4], 0
    %12 = vsyncpa [#allocation7], 0
    %13 = vsyncpa [#allocation5], 0
    // Predicated region
    $region2: #{tpu_custom_call.1} parent=1 // pred_check
      _
    $region3: #{tpu_custom_call.1} parent=1 // pred_check_branch
      %15 = sbr.rel (0) target = $region5
    $region4: #{tpu_custom_call.1} parent=1 // pred_region
      %s17 = ssub.s32 128, 128
      %18 = vsyncadd [#allocation4], %s17
      %s20 = sshll.u32 [#allocation3], 4
      %s21 = int_to_ptr.vmem [resolvable:$true] %s20
      %23 = dma.hbm_to_vmem [thread:$0]  %s0, 128, %s21, [#allocation4]
    $region5: #{tpu_custom_call.1} parent=1 // pred_fallthru
      _
    // Predicated region
    $region6: #{tpu_custom_call.1} parent=1 // pred_check
      _
    $region7: #{tpu_custom_call.1} parent=1 // pred_check_branch
      %25 = sbr.rel (0) target = $region9
    $region8: #{tpu_custom_call.1} parent=1 // pred_region
      %s27 = ssub.s32 512, 512
      %28 = vsyncadd [#allocation7], %s27
      %s29 = sshll.u32 [#allocation6], 4
      %s30 = int_to_ptr.vmem [resolvable:$true] %s29
      %35 = dma.hbm_to_vmem [thread:$0]  %s1, 512, %s30, [#allocation7], 128, 128, 8
    $region9: #{tpu_custom_call.1} parent=1 // pred_fallthru
      _
    // Predicated region
    $region10: #{tpu_custom_call.1} parent=1 // pred_check
      _
    $region11: #{tpu_custom_call.1} parent=1 // pred_check_branch
      %37 = sbr.rel (0) target = $region13
    $region12: #{tpu_custom_call.1} parent=1 // pred_region
      _
    $region13: #{tpu_custom_call.1} parent=1 // pred_fallthru
      _
    // Predicated region
    $region14: #{tpu_custom_call.1} parent=1 // pred_check
      _
    $region15: #{tpu_custom_call.1} parent=1 // pred_check_branch
      %39 = sbr.rel (0) target = $region17
    $region16: #{tpu_custom_call.1} parent=1 // pred_region
      _
    $region17: #{tpu_custom_call.1} parent=1 // pred_fallthru
      _
    // Predicated region
    $region18: #{tpu_custom_call.1} parent=1 // pred_check
      _
    $region19: #{tpu_custom_call.1} parent=1 // pred_check_branch
      %41 = sbr.rel (0) target = $region21
    $region20: #{tpu_custom_call.1} parent=1 // pred_region
      _
    $region21: #{tpu_custom_call.1} parent=1 // pred_fallthru
      _
    // Predicated region
    $region22: #{tpu_custom_call.1} parent=1 // pred_check
      _
    $region23: #{tpu_custom_call.1} parent=1 // pred_check_branch
      %43 = sbr.rel (0) target = $region25
    $region24: #{tpu_custom_call.1} parent=1 // pred_region
      %44 = dma.done [#allocation4], 128
    $region25: #{tpu_custom_call.1} parent=1 // pred_fallthru
      _
    // Predicated region
    $region26: #{tpu_custom_call.1} parent=1 // pred_check
      _
    $region27: #{tpu_custom_call.1} parent=1 // pred_check_branch
      %46 = sbr.rel (0) target = $region29
    $region28: #{tpu_custom_call.1} parent=1 // pred_region
      %47 = dma.done [#allocation7], 512
    $region29: #{tpu_custom_call.1} parent=1 // pred_fallthru
      _
    %v48 = vld [vmem:[#allocation3] sm:$0xff]
    %v49 = vld [vmem:[#allocation6] sm:$0xff]
    %v50 = vld [vmem:[#allocation6 + $0x8] sm:$0xff]
    %v51 = vld [vmem:[#allocation6 + $0x10] sm:$0xff]
    %v52 = vld [vmem:[#allocation6 + $0x18] sm:$0xff]
    %v53 = vld [vmem:[%s2] sm:$0x1]
    %v55 = vlaneseq
    %v56 = vshrl.u32 %v55, 7
    %v57 = vsub.s32 0, %v56
    %v58 = vrot.slane %v53, %v57
    %vm60 = vcmask 261120
    %v62 = vsel %vm60, %v48, 0
    %64 = vmatprep.subr.mxu0 0.0
    %65 = vmatpush1.msra.mxu0 %v49
    %66 = vmatprep.subr.mxu0 0.0
    %67 = vmatpush1.msra.mxu0 %v50
    %68 = vmatprep.subr.mxu0 0.0
    %69 = vmatpush1.msra.mxu0 %v51
    %70 = vmatprep.subr.mxu0 0.0
    %71 = vmatpush1.msra.mxu0 %v52
    %72 = vmatprep.subr.mxu0 0.0
    %73 = vmatpush1.msra.mxu0 0.0
    %74 = vmatprep.subr.mxu0 0.0
    %75 = vmatpush1.msra.mxu0 0.0
    %76 = vmatprep.subr.mxu0 0.0
    %77 = vmatpush1.msra.mxu0 0.0
    %78 = vmatprep.subr.mxu0 0.0
    %79 = vmatpush1.msra.mxu0 0.0
    %80 = vmatprep.subr.mxu0 0.0
    %81 = vmatpush1.msra.mxu0 0.0
    %82 = vmatprep.subr.mxu0 0.0
    %83 = vmatpush1.msra.mxu0 0.0
    %84 = vmatprep.subr.mxu0 0.0
    %85 = vmatpush1.msra.mxu0 0.0
    %86 = vmatprep.subr.mxu0 0.0
    %87 = vmatpush1.msra.mxu0 0.0
    %88 = vmatprep.subr.mxu0 0.0
    %89 = vmatpush1.msra.mxu0 0.0
    %90 = vmatprep.subr.mxu0 0.0
    %91 = vmatpush1.msra.mxu0 0.0
    %92 = vmatprep.subr.mxu0 0.0
    %93 = vmatpush1.msra.mxu0 0.0
    %94 = vmatprep.subr.mxu0 0.0
    %95 = vmatpush1.msra.mxu0 0.0
    %96 = vmatprep.subr.mxu0 0.0
    %97 = vmatpush1.msra.mxu0 0.0
    %98 = vmatprep.subr.mxu0 0.0
    %99 = vmatpush1.msra.mxu0 0.0
    %100 = vmatprep.subr.mxu0 0.0
    %101 = vmatpush1.msra.mxu0 0.0
    %102 = vmatprep.subr.mxu0 0.0
    %103 = vmatpush1.msra.mxu0 0.0
    %104 = vmatprep.subr.mxu0 0.0
    %105 = vmatpush1.msra.mxu0 0.0
    %106 = vmatprep.subr.mxu0 0.0
    %107 = vmatpush1.msra.mxu0 0.0
    %108 = vmatprep.subr.mxu0 0.0
    %109 = vmatpush1.msra.mxu0 0.0
    %110 = vmatprep.subr.mxu0 0.0
    %111 = vmatpush1.msra.mxu0 0.0
    %112 = vmatprep.subr.mxu0 0.0
    %113 = vmatpush1.msra.mxu0 0.0
    %114 = vmatprep.subr.mxu0 0.0
    %115 = vmatpush1.msra.mxu0 0.0
    %116 = vmatprep.subr.mxu0 0.0
    %117 = vmatpush1.msra.mxu0 0.0
    %118 = vmatprep.subr.mxu0 0.0
    %119 = vmatpush1.msra.mxu0 0.0
    %120 = vmatprep.subr.mxu0 0.0
    %121 = vmatpush1.msra.mxu0 0.0
    %122 = vmatprep.subr.mxu0 0.0
    %123 = vmatpush1.msra.mxu0 0.0
    %124 = vmatprep.subr.mxu0 0.0
    %125 = vmatpush1.msra.mxu0 0.0
    %126 = vmatprep.subr.mxu0 0.0
    %127 = vmatpush1.msra.mxu0 0.0
    %128 = vmatprep.mubr.f32.mxu0 0.0
    %129 = vmatmul.mubr.f32.gmra.mrb[0].mxu0 %v62
    %v130 = vpop.f32.mrb[0].mxu0
    %v131 = vadd.f32 %v58, %v130
    %v132 = vpop.f32.mrb[0].mxu0
    %133 = vdwg.mxu0
    %v134 = vmax.f32 %v131, 0.0
    %v135 = vld [vmem:[%s3] sm:$0x1]
    %v137 = vlaneseq
    %v138 = vshrl.u32 %v137, 7
    %v139 = vsub.s32 0, %v138
    %v140 = vrot.slane %v135, %v139
    %v142 = vmul.f32 %v134, %v140
    %v143 = vsel %vm60, %v142, 0.0
    %144 = vadd.xlane.f32.xlu0 %v143
    %v145 = vpop.xlane.xlu0 %144
    %s146 = sld [smem:[#allocation2]]
    %v147 = vstv %s146
    %v148 = vadd.f32 %v145, %v147
    %v150 = vlaneseq
    %v151 = vand.u32 %v150, 127
    %v152 = vlaneseq
    %v153 = vshrl.u32 %v152, 7
    %v154 = vsub.s32 %v151, %v153
    %v155 = vrot.slane %v148, %v154
    %vm157 = vcmask 57344
    %158 = vst.msk [vmem:[#allocation8] sm:$0x1] %vm157, %v155
    // Predicated region
    $region30: #{tpu_custom_call.1} parent=1 // pred_check
      _
    $region31: #{tpu_custom_call.1} parent=1 // pred_check_branch
      %160 = sbr.rel (0) target = $region33
    $region32: #{tpu_custom_call.1} parent=1 // pred_region
      %s162 = ssub.s32 16, 16
      %163 = vsyncadd [#allocation5], %s162
      %s165 = sshll.u32 [#allocation8], 4
      %s166 = int_to_ptr.vmem [resolvable:$true] %s165
      %168 = dma.vmem_to_hbm [thread:$0]  %s166, 16, %s5, [#allocation5]
    $region33: #{tpu_custom_call.1} parent=1 // pred_fallthru
      _
    // Predicated region
    $region34: #{tpu_custom_call.1} parent=1 // pred_check
      _
    $region35: #{tpu_custom_call.1} parent=1 // pred_check_branch
      %170 = sbr.rel (0) target = $region37
    $region36: #{tpu_custom_call.1} parent=1 // pred_region
      %171 = dma.done [#allocation5], 16
    $region37: #{tpu_custom_call.1} parent=1 // pred_fallthru
      _
    %172 = vsyncpa [#allocation4], 1
    %173 = vsyncpa [#allocation7], 1
    %174 = vsyncpa [#allocation5], 1

</llo_original>
